<compile_context>
chip_gen: v5e
topology: v5e:2x2
jax: 0.10.0
libtpu: 0.0.40
codegen_flags: <defaults>
</compile_context>

<pallas_src>
import jax
import jax.numpy as jnp
from jax.experimental import pallas as pl
from jax.experimental.pallas import tpu as pltpu


def _round_up(v, m):
    return ((v + m - 1) // m) * m


def mlp_kernel(x_ref, w1_ref, b1_ref, w2_ref, b2_ref, w3_ref, b3_ref, o_ref):
    # Cast the f32 input tile to the MXU compute dtype in-kernel (free under DMA).
    x = x_ref[...].astype(w1_ref.dtype)

    # Layer 1: Linear (bf16 MXU, f32 accumulate) + Sigmoid (EUP exp + approx recip).
    h1 = jnp.dot(x, w1_ref[...], preferred_element_type=jnp.float32) + b1_ref[...]
    h1 = pl.reciprocal(1.0 + jnp.exp(-h1), approx=True)

    # Layer 2: Linear + Sigmoid.
    h2 = jnp.dot(h1.astype(w2_ref.dtype), w2_ref[...],
                 preferred_element_type=jnp.float32) + b2_ref[...]
    h2 = pl.reciprocal(1.0 + jnp.exp(-h2), approx=True)

    # Layer 3: Linear (no activation, matches forward()).
    out = jnp.dot(h2.astype(w3_ref.dtype), w3_ref[...],
                  preferred_element_type=jnp.float32)
    o_ref[...] = (out + b3_ref[...]).astype(o_ref.dtype)


def prepare_params(params, compute_dtype=jnp.bfloat16):
    """One-time param prep (hoisted out of the per-call path): weights as
    [in, out] in bf16 for the MXU, biases as [1, out] in f32."""
    w1, b1, w2, b2, w3, b3 = params
    return (w1.astype(compute_dtype), b1.astype(jnp.float32).reshape(1, -1),
            w2.astype(compute_dtype), b2.astype(jnp.float32).reshape(1, -1),
            w3.astype(compute_dtype), b3.astype(jnp.float32).reshape(1, -1))


def simple_estimator_forward(x, prepared_params, *, block_batch=1024):
    """Fused 3-layer MLP forward.

    x stays f32/unpadded in HBM; weights/biases (already bf16/f32 from
    prepare_params) stay VMEM-resident via constant index maps; the batch is
    tiled so x/out DMAs pipeline and the batch axis splits across cores.
    """
    w1, b1, w2, b2, w3, b3 = prepared_params
    batch, num_inputs = x.shape
    num_hidden1 = w1.shape[1]
    num_hidden2 = w2.shape[1]
    num_outputs = w3.shape[1]

    # Batch tile: multiple of 8, big enough to amortize ~0.35us per-grid-step
    # overhead, but capped so there are >=2 grid steps when the batch allows
    # (so the "parallel" axis actually uses both TensorCores on v7x).
    tb = max(8, min(block_batch, _round_up(pl.cdiv(batch, 2), 8)))
    grid = (pl.cdiv(batch, tb),)

    resident = lambda a: pl.BlockSpec(a.shape, lambda i: (0, 0))  # VMEM-resident

    flops = 2 * batch * (num_inputs * num_hidden1
                         + num_hidden1 * num_hidden2
                         + num_hidden2 * num_outputs)
    transcendentals = batch * (num_hidden1 + num_hidden2)
    bytes_accessed = (
        x.size * x.dtype.itemsize
        + sum(a.size * a.dtype.itemsize for a in (w1, b1, w2, b2, w3, b3))
        + batch * num_outputs * 4)

    return pl.pallas_call(
        mlp_kernel,
        out_shape=jax.ShapeDtypeStruct((batch, num_outputs), jnp.float32),
        grid=grid,
        in_specs=[pl.BlockSpec((tb, num_inputs), lambda i: (i, 0)),
                  resident(w1), resident(b1),
                  resident(w2), resident(b2),
                  resident(w3), resident(b3)],
        out_specs=pl.BlockSpec((tb, num_outputs), lambda i: (i, 0)),
        compiler_params=pltpu.CompilerParams(
            dimension_semantics=("parallel",)),
        cost_estimate=pl.CostEstimate(
            flops=flops,
            transcendentals=transcendentals,
            bytes_accessed=bytes_accessed),
    )(x, w1, b1, w2, b2, w3, b3)


def init_params(key, num_inputs, num_hidden1, num_hidden2, num_outputs):
    """Deterministic init mimicking torch.nn.Linear's U(-1/sqrt(fan_in), +...).
    Weights stored as [in, out], biases as [1, out], all f32."""
    ks = jax.random.split(key, 6)

    def layer(kw, kb, fan_in, fan_out):
        bound = 1.0 / jnp.sqrt(fan_in)
        w = jax.random.uniform(kw, (fan_in, fan_out), jnp.float32, -bound, bound)
        b = jax.random.uniform(kb, (1, fan_out), jnp.float32, -bound, bound)
        return w, b

    w1, b1 = layer(ks[0], ks[1], num_inputs, num_hidden1)
    w2, b2 = layer(ks[2], ks[3], num_hidden1, num_hidden2)
    w3, b3 = layer(ks[4], ks[5], num_hidden2, num_outputs)
    return (w1, b1, w2, b2, w3, b3)


def reference_forward(x, params):
    w1, b1, w2, b2, w3, b3 = params
    h1 = jax.nn.sigmoid(x @ w1 + b1)
    h2 = jax.nn.sigmoid(h1 @ w2 + b2)
    return h2 @ w3 + b3


if __name__ == "__main__":
    # Small shapes consistent with the module's constructor signature.
    batch, num_inputs, num_hidden1, num_hidden2, num_outputs = 8, 32, 64, 32, 8

    key = jax.random.PRNGKey(0)
    k_x, k_p = jax.random.split(key)
    x = jax.random.normal(k_x, (batch, num_inputs), jnp.float32)
    params = init_params(k_p, num_inputs, num_hidden1, num_hidden2, num_outputs)
    prepared = prepare_params(params)

    out = simple_estimator_forward(x, prepared)
    out = jax.block_until_ready(out)

    ref = reference_forward(x, params)
    assert out.shape == (batch, num_outputs)
    # bf16 MXU inputs with f32 accumulation (+ approx reciprocal in sigmoid)
    # -> compare against the f32 reference at a bf16-appropriate tolerance.
    err = float(jnp.max(jnp.abs(out - ref)))
    assert jnp.allclose(out, ref, atol=5e-2, rtol=5e-2), err

    print("KERNEL_OK")
</pallas_src>

<mosaic_0001>
module attributes {stable_mosaic.version = 11 : i64} {
  func.func @mlp_kernel(%arg0: i32, %arg1: memref<8x32xf32, #tpu.memory_space<vmem>>, %arg2: memref<32x64xbf16, #tpu.memory_space<vmem>>, %arg3: memref<1x64xf32, #tpu.memory_space<vmem>>, %arg4: memref<64x32xbf16, #tpu.memory_space<vmem>>, %arg5: memref<1x32xf32, #tpu.memory_space<vmem>>, %arg6: memref<32x8xbf16, #tpu.memory_space<vmem>>, %arg7: memref<1x8xf32, #tpu.memory_space<vmem>>, %arg8: memref<8x8xf32, #tpu.memory_space<vmem>>) attributes {dimension_semantics = [#tpu.dimension_semantics<parallel>], iteration_bounds = array<i64: 1>, scalar_prefetch = 0 : i64, scratch_operands = 0 : i64, tpu.core_type = #tpu.core_type<tc>, window_params = [{transform_indices = @transform_0, window_bounds = array<i64: 8, 32>}, {pipeline_mode = #tpu.pipeline_mode<synchronous>, transform_indices = @transform_1, window_bounds = array<i64: 32, 64>}, {pipeline_mode = #tpu.pipeline_mode<synchronous>, transform_indices = @transform_2, window_bounds = array<i64: 1, 64>}, {pipeline_mode = #tpu.pipeline_mode<synchronous>, transform_indices = @transform_3, window_bounds = array<i64: 64, 32>}, {pipeline_mode = #tpu.pipeline_mode<synchronous>, transform_indices = @transform_4, window_bounds = array<i64: 1, 32>}, {pipeline_mode = #tpu.pipeline_mode<synchronous>, transform_indices = @transform_5, window_bounds = array<i64: 32, 8>}, {pipeline_mode = #tpu.pipeline_mode<synchronous>, transform_indices = @transform_6, window_bounds = array<i64: 1, 8>}, {transform_indices = @transform_7, window_bounds = array<i64: 8, 8>}]} {
    %c0 = arith.constant 0 : index
    %c0_0 = arith.constant 0 : index
    %0 = vector.load %arg1[%c0, %c0_0] : memref<8x32xf32, #tpu.memory_space<vmem>>, vector<8x32xf32>
    %1 = arith.truncf %0 : vector<8x32xf32> to vector<8x32xbf16>
    %c0_1 = arith.constant 0 : index
    %c0_2 = arith.constant 0 : index
    %2 = vector.load %arg2[%c0_1, %c0_2] : memref<32x64xbf16, #tpu.memory_space<vmem>>, vector<32x64xbf16>
    %cst = arith.constant dense<0.000000e+00> : vector<8x64xf32>
    %3 = tpu.matmul %1, %2, %cst {dimension_numbers = #tpu.dot_dimension_numbers<[1], [0], [0], [1], [0, 0, 1, 1], [], []>} : vector<8x32xbf16>, vector<32x64xbf16>, vector<8x64xf32> -> vector<8x64xf32>
    %c0_3 = arith.constant 0 : index
    %c0_4 = arith.constant 0 : index
    %4 = vector.load %arg3[%c0_3, %c0_4] : memref<1x64xf32, #tpu.memory_space<vmem>>, vector<1x64xf32>
    %5 = vector.broadcast %4 : vector<1x64xf32> to vector<8x64xf32>
    %6 = arith.addf %3, %5 : vector<8x64xf32>
    %cst_5 = arith.constant 0.000000e+00 : f32
    %7 = vector.broadcast %cst_5 : f32 to vector<8x64xf32>
    %8 = arith.subf %7, %6 : vector<8x64xf32>
    %9 = math.exp %8 : vector<8x64xf32>
    %cst_6 = arith.constant 1.000000e+00 : f32
    %10 = vector.broadcast %cst_6 : f32 to vector<8x64xf32>
    %11 = arith.addf %10, %9 : vector<8x64xf32>
    %12 = tpu.reciprocal %11 {approx = true} : vector<8x64xf32> -> vector<8x64xf32>
    %13 = arith.truncf %12 : vector<8x64xf32> to vector<8x64xbf16>
    %c0_7 = arith.constant 0 : index
    %c0_8 = arith.constant 0 : index
    %14 = vector.load %arg4[%c0_7, %c0_8] : memref<64x32xbf16, #tpu.memory_space<vmem>>, vector<64x32xbf16>
    %cst_9 = arith.constant dense<0.000000e+00> : vector<8x32xf32>
    %15 = tpu.matmul %13, %14, %cst_9 {dimension_numbers = #tpu.dot_dimension_numbers<[1], [0], [0], [1], [0, 0, 1, 1], [], []>} : vector<8x64xbf16>, vector<64x32xbf16>, vector<8x32xf32> -> vector<8x32xf32>
    %c0_10 = arith.constant 0 : index
    %c0_11 = arith.constant 0 : index
    %16 = vector.load %arg5[%c0_10, %c0_11] : memref<1x32xf32, #tpu.memory_space<vmem>>, vector<1x32xf32>
    %17 = vector.broadcast %16 : vector<1x32xf32> to vector<8x32xf32>
    %18 = arith.addf %15, %17 : vector<8x32xf32>
    %cst_12 = arith.constant 0.000000e+00 : f32
    %19 = vector.broadcast %cst_12 : f32 to vector<8x32xf32>
    %20 = arith.subf %19, %18 : vector<8x32xf32>
    %21 = math.exp %20 : vector<8x32xf32>
    %cst_13 = arith.constant 1.000000e+00 : f32
    %22 = vector.broadcast %cst_13 : f32 to vector<8x32xf32>
    %23 = arith.addf %22, %21 : vector<8x32xf32>
    %24 = tpu.reciprocal %23 {approx = true} : vector<8x32xf32> -> vector<8x32xf32>
    %25 = arith.truncf %24 : vector<8x32xf32> to vector<8x32xbf16>
    %c0_14 = arith.constant 0 : index
    %c0_15 = arith.constant 0 : index
    %26 = vector.load %arg6[%c0_14, %c0_15] : memref<32x8xbf16, #tpu.memory_space<vmem>>, vector<32x8xbf16>
    %cst_16 = arith.constant dense<0.000000e+00> : vector<8x8xf32>
    %27 = tpu.matmul %25, %26, %cst_16 {dimension_numbers = #tpu.dot_dimension_numbers<[1], [0], [0], [1], [0, 0, 1, 1], [], []>} : vector<8x32xbf16>, vector<32x8xbf16>, vector<8x8xf32> -> vector<8x8xf32>
    %c0_17 = arith.constant 0 : index
    %c0_18 = arith.constant 0 : index
    %28 = vector.load %arg7[%c0_17, %c0_18] : memref<1x8xf32, #tpu.memory_space<vmem>>, vector<1x8xf32>
    %29 = vector.broadcast %28 : vector<1x8xf32> to vector<8x8xf32>
    %30 = arith.addf %27, %29 : vector<8x8xf32>
    %c0_19 = arith.constant 0 : index
    %c0_20 = arith.constant 0 : index
    %31 = vector.load %arg8[%c0_19, %c0_20] : memref<8x8xf32, #tpu.memory_space<vmem>>, vector<8x8xf32>
    tpu.vector_store %arg8[%c0_19, %c0_20], %30 {strides = array<i32>} : memref<8x8xf32, #tpu.memory_space<vmem>>, vector<8x8xf32>,
    return
  }
  func.func @transform_0(%arg0: i32) -> (i32, i32) {
    %c0_i32 = arith.constant 0 : i32
    %c0_i32_0 = arith.constant 0 : i32
    return %arg0, %c0_i32 : i32, i32
  }
  func.func @transform_1(%arg0: i32) -> (i32, i32) {
    %c0_i32 = arith.constant 0 : i32
    %c0_i32_0 = arith.constant 0 : i32
    %c0_i32_1 = arith.constant 0 : i32
    return %c0_i32, %c0_i32_0 : i32, i32
  }
  func.func @transform_2(%arg0: i32) -> (i32, i32) {
    %c0_i32 = arith.constant 0 : i32
    %c0_i32_0 = arith.constant 0 : i32
    %c0_i32_1 = arith.constant 0 : i32
    return %c0_i32, %c0_i32_0 : i32, i32
  }
  func.func @transform_3(%arg0: i32) -> (i32, i32) {
    %c0_i32 = arith.constant 0 : i32
    %c0_i32_0 = arith.constant 0 : i32
    %c0_i32_1 = arith.constant 0 : i32
    return %c0_i32, %c0_i32_0 : i32, i32
  }
  func.func @transform_4(%arg0: i32) -> (i32, i32) {
    %c0_i32 = arith.constant 0 : i32
    %c0_i32_0 = arith.constant 0 : i32
    %c0_i32_1 = arith.constant 0 : i32
    return %c0_i32, %c0_i32_0 : i32, i32
  }
  func.func @transform_5(%arg0: i32) -> (i32, i32) {
    %c0_i32 = arith.constant 0 : i32
    %c0_i32_0 = arith.constant 0 : i32
    %c0_i32_1 = arith.constant 0 : i32
    return %c0_i32, %c0_i32_0 : i32, i32
  }
  func.func @transform_6(%arg0: i32) -> (i32, i32) {
    %c0_i32 = arith.constant 0 : i32
    %c0_i32_0 = arith.constant 0 : i32
    %c0_i32_1 = arith.constant 0 : i32
    return %c0_i32, %c0_i32_0 : i32, i32
  }
  func.func @transform_7(%arg0: i32) -> (i32, i32) {
    %c0_i32 = arith.constant 0 : i32
    %c0_i32_0 = arith.constant 0 : i32
    return %arg0, %c0_i32 : i32, i32
  }
}

</mosaic_0001>

<llo_original>
// kernel: tpu_custom_call.1
$region0: #{tpu_custom_call.1}
  #allocation0 [shape = 'u32[]', space=smem, size = 0x4, offset = 0x4, fixed_abs, tag = 'smem constant byte address 0x4 - core index']
  #allocation1 [shape = 'u32[72,128]{1,0:T(1,128)}', space=vmem, size = 0x9000, scoped, tag = 'internal scratch']
  %s0 = inlined_call_operand.vmem [shape: f32[8,32], index: 0, kind: input, shape index: {}]
  %s1 = inlined_call_operand.vmem [shape: bf16[32,64], index: 1, kind: input, shape index: {}]
  %s2 = inlined_call_operand.vmem [shape: f32[1,64], index: 2, kind: input, shape index: {}]
  %s3 = inlined_call_operand.vmem [shape: bf16[64,32], index: 3, kind: input, shape index: {}]
  %s4 = inlined_call_operand.vmem [shape: f32[1,32], index: 4, kind: input, shape index: {}]
  %s5 = inlined_call_operand.vmem [shape: bf16[32,8], index: 5, kind: input, shape index: {}]
  %s6 = inlined_call_operand.vmem [shape: f32[1,8], index: 6, kind: input, shape index: {}]
  %s7 = inlined_call_operand.hbm [shape: f32[8,8], index: 7, kind: output, shape index: {}]
  %s8 = sld [smem:[#allocation0]]
  $region38: #{tpu_custom_call.1} parent=0
    _
  %s10 = ssub.s32 1, %s8
  %s11 = scalar_select 0, %s10, %s8
  $region1: #{tpu_custom_call.1} parent=0
    #allocation2 [shape = 'u8[4096]{0}', space=vmem, size = 0x1000, scoped, tag = 'output window, operand 0, single buffered']
    #allocation3 [shape = 's32[1]{0}', space=sflag, size = 0x4, scoped, tag = 'scoped memory for tpu_custom_call.1']
    %12 = vsyncpa [#allocation3], 0
    // Predicated region
    $region2: #{tpu_custom_call.1} parent=1 // pred_check
      _
    $region3: #{tpu_custom_call.1} parent=1 // pred_check_branch
      %14 = sbr.rel (0) target = $region5
    $region4: #{tpu_custom_call.1} parent=1 // pred_region
      _
    $region5: #{tpu_custom_call.1} parent=1 // pred_fallthru
      _
    // Predicated region
    $region6: #{tpu_custom_call.1} parent=1 // pred_check
      _
    $region7: #{tpu_custom_call.1} parent=1 // pred_check_branch
      %16 = sbr.rel (0) target = $region9
    $region8: #{tpu_custom_call.1} parent=1 // pred_region
      _
    $region9: #{tpu_custom_call.1} parent=1 // pred_fallthru
      _
    // Predicated region
    $region10: #{tpu_custom_call.1} parent=1 // pred_check
      _
    $region11: #{tpu_custom_call.1} parent=1 // pred_check_branch
      %18 = sbr.rel (0) target = $region13
    $region12: #{tpu_custom_call.1} parent=1 // pred_region
      _
    $region13: #{tpu_custom_call.1} parent=1 // pred_fallthru
      _
    // Predicated region
    $region14: #{tpu_custom_call.1} parent=1 // pred_check
      _
    $region15: #{tpu_custom_call.1} parent=1 // pred_check_branch
      %20 = sbr.rel (0) target = $region17
    $region16: #{tpu_custom_call.1} parent=1 // pred_region
      _
    $region17: #{tpu_custom_call.1} parent=1 // pred_fallthru
      _
    // Predicated region
    $region18: #{tpu_custom_call.1} parent=1 // pred_check
      _
    $region19: #{tpu_custom_call.1} parent=1 // pred_check_branch
      %22 = sbr.rel (0) target = $region21
    $region20: #{tpu_custom_call.1} parent=1 // pred_region
      _
    $region21: #{tpu_custom_call.1} parent=1 // pred_fallthru
      _
    // Predicated region
    $region22: #{tpu_custom_call.1} parent=1 // pred_check
      _
    $region23: #{tpu_custom_call.1} parent=1 // pred_check_branch
      %24 = sbr.rel (0) target = $region25
    $region24: #{tpu_custom_call.1} parent=1 // pred_region
      _
    $region25: #{tpu_custom_call.1} parent=1 // pred_fallthru
      _
    // Predicated region
    $region26: #{tpu_custom_call.1} parent=1 // pred_check
      _
    $region27: #{tpu_custom_call.1} parent=1 // pred_check_branch
      %26 = sbr.rel (0) target = $region29
    $region28: #{tpu_custom_call.1} parent=1 // pred_region
      _
    $region29: #{tpu_custom_call.1} parent=1 // pred_fallthru
      _
    %v28 = vld [vmem:[%s0] sm:$0xff]
    %v29 = vpack.c.bf16 %v28, %v28
    %v30 = vld [vmem:[%s1] sm:$0xf]
    %v31 = vld [vmem:[%s1 + $0x4] sm:$0xf]
    %v32 = vld [vmem:[%s1 + $0x8] sm:$0xf]
    %v33 = vld [vmem:[%s1 + $0xc] sm:$0xf]
    %v34 = vld [vmem:[%s2] sm:$0x1]
    %v36 = vperm.slane %v34, 0
    %v42 = vunpack.c.l.b16 %v30
    %v43 = vunpack.c.l.b16 %v31
    %v44 = vunpack.c.l.b16 %v32
    %v45 = vunpack.c.l.b16 %v33
    %v46 = vpack.c.b16 %v43, %v42
    %v47 = vpack.c.b16 %v45, %v44
    %vm50 = vcmask 261120
    %v52 = vsel %vm50, %v29, 0
    %54 = vmatpush.bf16.msra.mxu0 0
    %55 = vmatpush.bf16.msra.mxu0 0
    %56 = vmatpush.bf16.msra.mxu0 0
    %57 = vmatpush.bf16.msra.mxu0 0
    %58 = vmatpush.bf16.msra.mxu0 0
    %59 = vmatpush.bf16.msra.mxu0 0
    %60 = vmatpush.bf16.msra.mxu0 %v47
    %61 = vmatpush.bf16.msra.mxu0 %v46
    %62 = vmatmul.bf16.gmra.mxu0 %v52
    %v63 = vpop.f32.mrf.mxu0
    %v64 = vadd.f32 %v36, %v63
    %v65 = vpop.f32.mrf.mxu0
    %66 = vdwg.mxu0
    %v67 = vsub.f32 0.0, %v64
    %v68 = vmul.f32 %v67, 1.442695
    %v69 = vpow.pop %v68
    %v70 = vadd.f32 %v69, 1.0
    %v71 = vrcp.pop %v70
    %v72 = vpack.c.bf16 %v71, %v71
    %v73 = vld [vmem:[%s3] sm:$0xf]
    %v74 = vld [vmem:[%s3 + $0x4] sm:$0xf]
    %v75 = vld [vmem:[%s3 + $0x8] sm:$0xf]
    %v76 = vld [vmem:[%s3 + $0xc] sm:$0xf]
    %v77 = vld [vmem:[%s3 + $0x10] sm:$0xf]
    %v78 = vld [vmem:[%s3 + $0x14] sm:$0xf]
    %v79 = vld [vmem:[%s3 + $0x18] sm:$0xf]
    %v80 = vld [vmem:[%s3 + $0x1c] sm:$0xf]
    %v81 = vld [vmem:[%s4] sm:$0x1]
    %v83 = vperm.slane %v81, 0
    %v93 = vunpack.c.l.b16 %v73
    %v94 = vunpack.c.l.b16 %v74
    %v95 = vunpack.c.l.b16 %v75
    %v96 = vunpack.c.l.b16 %v76
    %v97 = vunpack.c.l.b16 %v77
    %v98 = vunpack.c.l.b16 %v78
    %v99 = vunpack.c.l.b16 %v79
    %v100 = vunpack.c.l.b16 %v80
    %v101 = vpack.c.b16 %v94, %v93
    %v102 = vpack.c.b16 %v96, %v95
    %v103 = vpack.c.b16 %v98, %v97
    %v104 = vpack.c.b16 %v100, %v99
    %vm109 = vcmask 523264
    %v111 = vsel %vm109, %v72, 0
    %113 = vmatpush.bf16.msra.mxu0 0
    %114 = vmatpush.bf16.msra.mxu0 0
    %115 = vmatpush.bf16.msra.mxu0 0
    %116 = vmatpush.bf16.msra.mxu0 0
    %117 = vmatpush.bf16.msra.mxu0 %v104
    %118 = vmatpush.bf16.msra.mxu0 %v103
    %119 = vmatpush.bf16.msra.mxu0 %v102
    %120 = vmatpush.bf16.msra.mxu0 %v101
    %121 = vmatmul.bf16.gmra.mxu0 %v111
    %v122 = vpop.f32.mrf.mxu0
    %v123 = vadd.f32 %v83, %v122
    %v124 = vpop.f32.mrf.mxu0
    %125 = vdwg.mxu0
    %v126 = vsub.f32 0.0, %v123
    %v127 = vmul.f32 %v126, 1.442695
    %v128 = vpow.pop %v127
    %v129 = vadd.f32 %v128, 1.0
    %v130 = vrcp.pop %v129
    %v131 = vpack.c.bf16 %v130, %v130
    %v132 = vld [vmem:[%s5] sm:$0xf]
    %v133 = vld [vmem:[%s5 + $0x4] sm:$0xf]
    %v134 = vld [vmem:[%s5 + $0x8] sm:$0xf]
    %v135 = vld [vmem:[%s5 + $0xc] sm:$0xf]
    %v136 = vld [vmem:[%s6] sm:$0x1]
    %v138 = vperm.slane %v136, 0
    %v144 = vunpack.c.l.b16 %v132
    %v145 = vunpack.c.l.b16 %v133
    %v146 = vunpack.c.l.b16 %v134
    %v147 = vunpack.c.l.b16 %v135
    %v148 = vpack.c.b16 %v145, %v144
    %v149 = vpack.c.b16 %v147, %v146
    %v153 = vsel %vm50, %v131, 0
    %155 = vmatpush.bf16.msra.mxu0 0
    %156 = vmatpush.bf16.msra.mxu0 0
    %157 = vmatpush.bf16.msra.mxu0 0
    %158 = vmatpush.bf16.msra.mxu0 0
    %159 = vmatpush.bf16.msra.mxu0 0
    %160 = vmatpush.bf16.msra.mxu0 0
    %161 = vmatpush.bf16.msra.mxu0 %v149
    %162 = vmatpush.bf16.msra.mxu0 %v148
    %163 = vmatmul.bf16.gmra.mxu0 %v153
    %v164 = vpop.f32.mrf.mxu0
    %v165 = vadd.f32 %v138, %v164
    %v166 = vpop.f32.mrf.mxu0
    %167 = vdwg.mxu0
    %vm168 = vcmask 64512
    %169 = vst.msk [vmem:[#allocation2] sm:$0xff] %vm168, %v165
    // Predicated region
    $region30: #{tpu_custom_call.1} parent=1 // pred_check
      _
    $region31: #{tpu_custom_call.1} parent=1 // pred_check_branch
      %171 = sbr.rel (0) target = $region33
    $region32: #{tpu_custom_call.1} parent=1 // pred_region
      %173 = vsyncadd [#allocation3], 0
      %s175 = sshll.u32 [#allocation2], 4
      %s176 = int_to_ptr.vmem [resolvable:$true] %s175
      %s177 = sshll.u32 %s7, 4
      %s178 = int_to_ptr.hbm [resolvable:$true] %s177
      %180 = dma.vmem_to_hbm [thread:$0]  %s176, 128, %s178, [#allocation3]
    $region33: #{tpu_custom_call.1} parent=1 // pred_fallthru
      _
    // Predicated region
    $region34: #{tpu_custom_call.1} parent=1 // pred_check
      _
    $region35: #{tpu_custom_call.1} parent=1 // pred_check_branch
      %182 = sbr.rel (0) target = $region37
    $region36: #{tpu_custom_call.1} parent=1 // pred_region
      %184 = dma.done [#allocation3], 128
    $region37: #{tpu_custom_call.1} parent=1 // pred_fallthru
      _
    %185 = vsyncpa [#allocation3], 1

</llo_original>
